<compile_context>
chip_gen: v5e
topology: v5e:2x2
jax: 0.10.0
libtpu: 0.0.40
codegen_flags: <defaults>
</compile_context>

<pallas_src>
import jax
import jax.numpy as jnp
from jax.experimental import pallas as pl
from jax.experimental.pallas import tpu as pltpu

# ----------------------------- hyper-params -----------------------------
NUM_FRAMES = 8            # sequence length fed to the decoder
C_IN = 4
H = W = 16
D_EMB = 32                # d_embedding
D_FF = 4 * D_EMB          # 128 (exactly one lane row)
NUM_STACKS = 2
KSIZE = 3
LN_EPS = 1e-5
_SCALE = 1.0 / float(D_EMB) ** 0.5

# Packed-parameter slab layout (static offsets).
W_ROWS_PER_STACK = 3 * D_EMB          # rows 0:32 [wqkv|wo], 32:64 w1, 64:96 w2^T
V_ROWS_PER_STACK = 8                  # qkv_b, b1, bo, g1, bt1, b2, g2, bt2
FC_ROW = NUM_STACKS * V_ROWS_PER_STACK  # fc_w^T in lanes 0:32, fc_b at lane 32


# ----------------------------- fused kernel -----------------------------
def vtn_kernel(x_ref, w_ref, v_ref, out_ref):
    """NUM_STACKS transformer decoder blocks + sequence-mean + Linear(D,1)."""
    x = x_ref[...]                                              # (S, D) f32

    for s in range(NUM_STACKS):                                 # unrolled, static
        wbase = s * W_ROWS_PER_STACK
        vbase = s * V_ROWS_PER_STACK

        # --- static slab views (bf16 weights) ---
        wblk = w_ref[wbase:wbase + D_EMB, :]                    # (D, 128)
        wqkv = wblk[:, :3 * D_EMB]                              # (D, 3D)  wq pre-scaled
        wo = wblk[:, 3 * D_EMB:]                                # (D, D)
        w1 = w_ref[wbase + D_EMB:wbase + 2 * D_EMB, :]          # (D, D_FF)
        w2t = w_ref[wbase + 2 * D_EMB:wbase + 3 * D_EMB, :]     # (D, D_FF) = w2^T

        # --- per-stack vectors (f32, sublane-broadcast loads) ---
        qkv_b = v_ref[vbase:vbase + 1, :3 * D_EMB]              # (1, 3D)
        b1 = v_ref[vbase + 1:vbase + 2, :]                      # (1, D_FF)
        bo = v_ref[vbase + 2:vbase + 3, :D_EMB]
        g1 = v_ref[vbase + 3:vbase + 4, :D_EMB]
        bt1 = v_ref[vbase + 4:vbase + 5, :D_EMB]
        b2 = v_ref[vbase + 5:vbase + 6, :D_EMB]
        g2 = v_ref[vbase + 6:vbase + 7, :D_EMB]
        bt2 = v_ref[vbase + 7:vbase + 8, :D_EMB]

        # --- fused QKV projection (one MXU matmul, bf16 operands, f32 acc) ---
        qkv = jnp.dot(x.astype(jnp.bfloat16), wqkv,
                      preferred_element_type=jnp.float32) + qkv_b   # (S, 3D)
        q = qkv[:, :D_EMB]
        k = qkv[:, D_EMB:2 * D_EMB]
        v = qkv[:, 2 * D_EMB:]

        # scores = q @ k^T (scale already folded into wq / q-bias).
        scores = jax.lax.dot_general(
            q, k, (((1,), (1,)), ((), ())),
            preferred_element_type=jnp.float32)                    # (S, S)
        m = jnp.max(scores, axis=-1, keepdims=True)
        e = jnp.exp(scores - m)
        attn = e * pl.reciprocal(jnp.sum(e, axis=-1, keepdims=True), approx=True)
        ctx = jnp.dot(attn, v, preferred_element_type=jnp.float32)  # (S, D)

        # --- residual + LayerNorm 1 ---
        h = x + jnp.dot(ctx.astype(jnp.bfloat16), wo,
                        preferred_element_type=jnp.float32) + bo
        mu = jnp.mean(h, axis=-1, keepdims=True)
        var = jnp.mean((h - mu) ** 2, axis=-1, keepdims=True)
        h = (h - mu) * jax.lax.rsqrt(var + LN_EPS) * g1 + bt1

        # --- FFN (w2 stored transposed -> contract last dims, no XLU cost) ---
        f = jnp.dot(h.astype(jnp.bfloat16), w1,
                    preferred_element_type=jnp.float32) + b1
        f = jnp.maximum(f, 0.0)
        f = jax.lax.dot_general(
            f.astype(jnp.bfloat16), w2t, (((1,), (1,)), ((), ())),
            preferred_element_type=jnp.float32) + b2

        # --- residual + LayerNorm 2 ---
        h2 = h + f
        mu2 = jnp.mean(h2, axis=-1, keepdims=True)
        var2 = jnp.mean((h2 - mu2) ** 2, axis=-1, keepdims=True)
        x = (h2 - mu2) * jax.lax.rsqrt(var2 + LN_EPS) * g2 + bt2

    # --- head: mean over sequence, Linear(D, 1) as mul + lane-reduce ---
    pooled = jnp.mean(x, axis=0, keepdims=True)                 # (1, D)
    fcrow = v_ref[FC_ROW:FC_ROW + 1, :]                         # (1, 128)
    fcw = fcrow[:, :D_EMB]
    fcb = fcrow[:, D_EMB:D_EMB + 1]
    out_ref[...] = jnp.sum(pooled * fcw, axis=-1, keepdims=True) + fcb


_VMEM_SPEC = pl.BlockSpec(memory_space=pltpu.MemorySpace.VMEM)

_vtn_fused = pl.pallas_call(
    vtn_kernel,
    out_shape=jax.ShapeDtypeStruct((1, 1), jnp.float32),
    in_specs=[_VMEM_SPEC, _VMEM_SPEC, _VMEM_SPEC],
    out_specs=_VMEM_SPEC,
)


# ----------------------------- params -----------------------------
def init_params(key):
    ks = jax.random.split(key, 4 + NUM_STACKS)
    # Encoder conv: PyTorch weight (D_EMB, C_IN, 3, 3) -> HWIO for lax.conv.
    cw = 0.1 * jax.random.normal(ks[0], (D_EMB, C_IN, KSIZE, KSIZE), jnp.float32)
    conv_w = jnp.transpose(cw, (2, 3, 1, 0))                    # (K, K, C_IN, D)
    conv_b = 0.1 * jax.random.normal(ks[1], (D_EMB,), jnp.float32)
    fc_w = 0.1 * jax.random.normal(ks[2], (D_EMB, 1), jnp.float32)
    fc_b = 0.1 * jax.random.normal(ks[3], (1,), jnp.float32)

    w_slab = jnp.zeros((NUM_STACKS * W_ROWS_PER_STACK, 128), jnp.float32)
    v_slab = jnp.zeros((NUM_STACKS * V_ROWS_PER_STACK + 1, 128), jnp.float32)

    for s in range(NUM_STACKS):
        sk = jax.random.split(ks[4 + s], 6)
        wq = 0.1 * jax.random.normal(sk[0], (D_EMB, D_EMB), jnp.float32)
        wk = 0.1 * jax.random.normal(sk[1], (D_EMB, D_EMB), jnp.float32)
        wv = 0.1 * jax.random.normal(sk[2], (D_EMB, D_EMB), jnp.float32)
        wo = 0.1 * jax.random.normal(sk[3], (D_EMB, D_EMB), jnp.float32)
        w1 = 0.1 * jax.random.normal(sk[4], (D_EMB, D_FF), jnp.float32)
        w2 = 0.1 * jax.random.normal(sk[5], (D_FF, D_EMB), jnp.float32)
        bqkv = jnp.zeros((3 * D_EMB,), jnp.float32)
        b1 = jnp.zeros((D_FF,), jnp.float32)
        bo = jnp.zeros((D_EMB,), jnp.float32)
        b2 = jnp.zeros((D_EMB,), jnp.float32)
        g1 = jnp.ones((D_EMB,), jnp.float32)
        bt1 = jnp.zeros((D_EMB,), jnp.float32)
        g2 = jnp.ones((D_EMB,), jnp.float32)
        bt2 = jnp.zeros((D_EMB,), jnp.float32)

        # Fold softmax 1/sqrt(D) into the q projection (weights + bias).
        wqkv = jnp.concatenate([wq * _SCALE, wk, wv], axis=1)   # (D, 3D)
        bqkv = bqkv.at[:D_EMB].multiply(_SCALE)

        wb = s * W_ROWS_PER_STACK
        w_slab = w_slab.at[wb:wb + D_EMB, :3 * D_EMB].set(wqkv)
        w_slab = w_slab.at[wb:wb + D_EMB, 3 * D_EMB:].set(wo)
        w_slab = w_slab.at[wb + D_EMB:wb + 2 * D_EMB, :].set(w1)
        w_slab = w_slab.at[wb + 2 * D_EMB:wb + 3 * D_EMB, :].set(w2.T)

        vb = s * V_ROWS_PER_STACK
        v_slab = v_slab.at[vb, :3 * D_EMB].set(bqkv)
        v_slab = v_slab.at[vb + 1, :].set(b1)
        for i, vec in enumerate([bo, g1, bt1, b2, g2, bt2]):
            v_slab = v_slab.at[vb + 2 + i, :D_EMB].set(vec)

    v_slab = v_slab.at[FC_ROW, :D_EMB].set(fc_w[:, 0])
    v_slab = v_slab.at[FC_ROW, D_EMB].set(fc_b[0])

    return {
        "conv_w": conv_w,
        "conv_b": conv_b,
        "w_slab": w_slab.astype(jnp.bfloat16),   # bf16 MXU operands
        "v_slab": v_slab,                         # f32 biases / LN / fc head
    }


# ----------------------------- forward -----------------------------
@jax.jit
def vtn_forward(clips, difficulty_levels, params):
    # Encoder: 3x3 "SAME" conv + bias + ReLU + per-frame global average pool,
    # all in XLA (the epilogue fuses into the conv) -> (num_frames, D_EMB).
    x_nhwc = jnp.transpose(clips, (0, 2, 3, 1))
    conv = jax.lax.conv_general_dilated(
        x_nhwc, params["conv_w"], window_strides=(1, 1), padding="SAME",
        dimension_numbers=("NHWC", "HWIO", "NHWC"))             # (N, H, W, D)
    feats = jnp.mean(jnp.maximum(conv + params["conv_b"], 0.0), axis=(1, 2))

    # Fused decoder stacks + head in a single Pallas call (3 input DMAs).
    y = _vtn_fused(feats, params["w_slab"], params["v_slab"])   # (1, 1)

    # difficulty scaling done on the host-side graph (avoids a (1,1) DMA).
    diff = jnp.asarray(difficulty_levels, jnp.float32).reshape(1)
    return diff * y.reshape(1)                                  # matches PyTorch (1,)


if __name__ == "__main__":
    key = jax.random.PRNGKey(0)
    k_in, k_par, _ = jax.random.split(key, 3)

    clips = jax.random.normal(k_in, (NUM_FRAMES, C_IN, H, W), jnp.float32)
    difficulty_levels = jnp.array([1.7], jnp.float32)
    params = init_params(k_par)

    out = vtn_forward(clips, difficulty_levels, params)
    jax.block_until_ready(out)
    assert out.shape == (1,) and bool(jnp.isfinite(out).all())
    print("KERNEL_OK")
</pallas_src>

<mosaic_0001>
module attributes {stable_mosaic.version = 11 : i64} {
  func.func @vtn_kernel(%arg0: memref<8x32xf32, #tpu.memory_space<vmem>>, %arg1: memref<192x128xbf16, #tpu.memory_space<vmem>>, %arg2: memref<17x128xf32, #tpu.memory_space<vmem>>, %arg3: memref<1x1xf32, #tpu.memory_space<vmem>>) attributes {dimension_semantics = [], scalar_prefetch = 0 : i64, scratch_operands = 0 : i64, tpu.core_type = #tpu.core_type<tc>} {
    %c0 = arith.constant 0 : index
    %c0_0 = arith.constant 0 : index
    %0 = vector.load %arg0[%c0, %c0_0] : memref<8x32xf32, #tpu.memory_space<vmem>>, vector<8x32xf32>
    %c0_1 = arith.constant 0 : index
    %c0_2 = arith.constant 0 : index
    %1 = vector.load %arg1[%c0_1, %c0_2] : memref<192x128xbf16, #tpu.memory_space<vmem>>, vector<32x128xbf16>
    %2 = vector.extract_strided_slice %1 {offsets = [0, 0], sizes = [32, 96], strides = [1, 1]} : vector<32x128xbf16> to vector<32x96xbf16>
    %3 = vector.extract_strided_slice %1 {offsets = [0, 96], sizes = [32, 32], strides = [1, 1]} : vector<32x128xbf16> to vector<32x32xbf16>
    %c32 = arith.constant 32 : index
    %c0_3 = arith.constant 0 : index
    %4 = vector.load %arg1[%c32, %c0_3] : memref<192x128xbf16, #tpu.memory_space<vmem>>, vector<32x128xbf16>
    %c64 = arith.constant 64 : index
    %c0_4 = arith.constant 0 : index
    %5 = vector.load %arg1[%c64, %c0_4] : memref<192x128xbf16, #tpu.memory_space<vmem>>, vector<32x128xbf16>
    %c0_5 = arith.constant 0 : index
    %c0_6 = arith.constant 0 : index
    %6 = vector.load %arg2[%c0_5, %c0_6] : memref<17x128xf32, #tpu.memory_space<vmem>>, vector<1x96xf32>
    %c1 = arith.constant 1 : index
    %c0_7 = arith.constant 0 : index
    %7 = vector.load %arg2[%c1, %c0_7] : memref<17x128xf32, #tpu.memory_space<vmem>>, vector<1x128xf32>
    %c2 = arith.constant 2 : index
    %c0_8 = arith.constant 0 : index
    %8 = vector.load %arg2[%c2, %c0_8] : memref<17x128xf32, #tpu.memory_space<vmem>>, vector<1x32xf32>
    %c3 = arith.constant 3 : index
    %c0_9 = arith.constant 0 : index
    %9 = vector.load %arg2[%c3, %c0_9] : memref<17x128xf32, #tpu.memory_space<vmem>>, vector<1x32xf32>
    %c4 = arith.constant 4 : index
    %c0_10 = arith.constant 0 : index
    %10 = vector.load %arg2[%c4, %c0_10] : memref<17x128xf32, #tpu.memory_space<vmem>>, vector<1x32xf32>
    %c5 = arith.constant 5 : index
    %c0_11 = arith.constant 0 : index
    %11 = vector.load %arg2[%c5, %c0_11] : memref<17x128xf32, #tpu.memory_space<vmem>>, vector<1x32xf32>
    %c6 = arith.constant 6 : index
    %c0_12 = arith.constant 0 : index
    %12 = vector.load %arg2[%c6, %c0_12] : memref<17x128xf32, #tpu.memory_space<vmem>>, vector<1x32xf32>
    %c7 = arith.constant 7 : index
    %c0_13 = arith.constant 0 : index
    %13 = vector.load %arg2[%c7, %c0_13] : memref<17x128xf32, #tpu.memory_space<vmem>>, vector<1x32xf32>
    %14 = arith.truncf %0 : vector<8x32xf32> to vector<8x32xbf16>
    %cst = arith.constant dense<0.000000e+00> : vector<8x96xf32>
    %15 = tpu.matmul %14, %2, %cst {dimension_numbers = #tpu.dot_dimension_numbers<[1], [0], [0], [1], [0, 0, 1, 1], [], []>} : vector<8x32xbf16>, vector<32x96xbf16>, vector<8x96xf32> -> vector<8x96xf32>
    %16 = vector.broadcast %6 : vector<1x96xf32> to vector<8x96xf32>
    %17 = arith.addf %15, %16 : vector<8x96xf32>
    %18 = vector.extract_strided_slice %17 {offsets = [0, 0], sizes = [8, 32], strides = [1, 1]} : vector<8x96xf32> to vector<8x32xf32>
    %19 = vector.extract_strided_slice %17 {offsets = [0, 32], sizes = [8, 32], strides = [1, 1]} : vector<8x96xf32> to vector<8x32xf32>
    %20 = vector.extract_strided_slice %17 {offsets = [0, 64], sizes = [8, 32], strides = [1, 1]} : vector<8x96xf32> to vector<8x32xf32>
    %cst_14 = arith.constant dense<0.000000e+00> : vector<8x8xf32>
    %21 = tpu.matmul %18, %19, %cst_14 {dimension_numbers = #tpu.dot_dimension_numbers<[1], [1], [0], [0], [0, 0, 1, 0], [], []>} : vector<8x32xf32>, vector<8x32xf32>, vector<8x8xf32> -> vector<8x8xf32>
    %cst_15 = arith.constant dense<0xFF800000> : vector<8xf32>
    %22 = vector.multi_reduction <maximumf>, %21, %cst_15 [1] : vector<8x8xf32> to vector<8xf32>
    %23 = vector.shape_cast %22 : vector<8xf32> to vector<8x1xf32>
    %24 = vector.broadcast %23 : vector<8x1xf32> to vector<8x8xf32>
    %25 = arith.subf %21, %24 : vector<8x8xf32>
    %26 = math.exp %25 : vector<8x8xf32>
    %cst_16 = arith.constant dense<0.000000e+00> : vector<8xf32>
    %27 = vector.multi_reduction <add>, %26, %cst_16 [1] : vector<8x8xf32> to vector<8xf32>
    %28 = vector.shape_cast %27 : vector<8xf32> to vector<8x1xf32>
    %29 = tpu.reciprocal %28 {approx = true} : vector<8x1xf32> -> vector<8x1xf32>
    %30 = vector.broadcast %29 : vector<8x1xf32> to vector<8x8xf32>
    %31 = arith.mulf %26, %30 : vector<8x8xf32>
    %cst_17 = arith.constant dense<0.000000e+00> : vector<8x32xf32>
    %32 = tpu.matmul %31, %20, %cst_17 {dimension_numbers = #tpu.dot_dimension_numbers<[1], [0], [0], [1], [0, 0, 1, 1], [], []>} : vector<8x8xf32>, vector<8x32xf32>, vector<8x32xf32> -> vector<8x32xf32>
    %33 = arith.truncf %32 : vector<8x32xf32> to vector<8x32xbf16>
    %cst_18 = arith.constant dense<0.000000e+00> : vector<8x32xf32>
    %34 = tpu.matmul %33, %3, %cst_18 {dimension_numbers = #tpu.dot_dimension_numbers<[1], [0], [0], [1], [0, 0, 1, 1], [], []>} : vector<8x32xbf16>, vector<32x32xbf16>, vector<8x32xf32> -> vector<8x32xf32>
    %35 = arith.addf %0, %34 : vector<8x32xf32>
    %36 = vector.broadcast %8 : vector<1x32xf32> to vector<8x32xf32>
    %37 = arith.addf %35, %36 : vector<8x32xf32>
    %cst_19 = arith.constant dense<0.000000e+00> : vector<8xf32>
    %38 = vector.multi_reduction <add>, %37, %cst_19 [1] : vector<8x32xf32> to vector<8xf32>
    %39 = vector.shape_cast %38 : vector<8xf32> to vector<8x1xf32>
    %cst_20 = arith.constant 3.200000e+01 : f32
    %40 = vector.broadcast %cst_20 : f32 to vector<8x1xf32>
    %41 = arith.divf %39, %40 : vector<8x1xf32>
    %42 = vector.broadcast %41 : vector<8x1xf32> to vector<8x32xf32>
    %43 = arith.subf %37, %42 : vector<8x32xf32>
    %44 = arith.mulf %43, %43 : vector<8x32xf32>
    %cst_21 = arith.constant dense<0.000000e+00> : vector<8xf32>
    %45 = vector.multi_reduction <add>, %44, %cst_21 [1] : vector<8x32xf32> to vector<8xf32>
    %46 = vector.shape_cast %45 : vector<8xf32> to vector<8x1xf32>
    %cst_22 = arith.constant 3.200000e+01 : f32
    %47 = vector.broadcast %cst_22 : f32 to vector<8x1xf32>
    %48 = arith.divf %46, %47 : vector<8x1xf32>
    %49 = vector.broadcast %41 : vector<8x1xf32> to vector<8x32xf32>
    %50 = arith.subf %37, %49 : vector<8x32xf32>
    %cst_23 = arith.constant 9.99999974E-6 : f32
    %51 = vector.broadcast %cst_23 : f32 to vector<8x1xf32>
    %52 = arith.addf %48, %51 : vector<8x1xf32>
    %53 = math.rsqrt %52 : vector<8x1xf32>
    %54 = vector.broadcast %53 : vector<8x1xf32> to vector<8x32xf32>
    %55 = arith.mulf %50, %54 : vector<8x32xf32>
    %56 = vector.broadcast %9 : vector<1x32xf32> to vector<8x32xf32>
    %57 = arith.mulf %55, %56 : vector<8x32xf32>
    %58 = vector.broadcast %10 : vector<1x32xf32> to vector<8x32xf32>
    %59 = arith.addf %57, %58 : vector<8x32xf32>
    %60 = arith.truncf %59 : vector<8x32xf32> to vector<8x32xbf16>
    %cst_24 = arith.constant dense<0.000000e+00> : vector<8x128xf32>
    %61 = tpu.matmul %60, %4, %cst_24 {dimension_numbers = #tpu.dot_dimension_numbers<[1], [0], [0], [1], [0, 0, 1, 1], [], []>} : vector<8x32xbf16>, vector<32x128xbf16>, vector<8x128xf32> -> vector<8x128xf32>
    %62 = vector.broadcast %7 : vector<1x128xf32> to vector<8x128xf32>
    %63 = arith.addf %61, %62 : vector<8x128xf32>
    %cst_25 = arith.constant 0.000000e+00 : f32
    %64 = vector.broadcast %cst_25 : f32 to vector<8x128xf32>
    %65 = arith.maximumf %63, %64 : vector<8x128xf32>
    %66 = arith.truncf %65 : vector<8x128xf32> to vector<8x128xbf16>
    %cst_26 = arith.constant dense<0.000000e+00> : vector<8x32xf32>
    %67 = tpu.matmul %66, %5, %cst_26 {dimension_numbers = #tpu.dot_dimension_numbers<[1], [1], [0], [0], [0, 0, 1, 0], [], []>} : vector<8x128xbf16>, vector<32x128xbf16>, vector<8x32xf32> -> vector<8x32xf32>
    %68 = vector.broadcast %11 : vector<1x32xf32> to vector<8x32xf32>
    %69 = arith.addf %67, %68 : vector<8x32xf32>
    %70 = arith.addf %59, %69 : vector<8x32xf32>
    %cst_27 = arith.constant dense<0.000000e+00> : vector<8xf32>
    %71 = vector.multi_reduction <add>, %70, %cst_27 [1] : vector<8x32xf32> to vector<8xf32>
    %72 = vector.shape_cast %71 : vector<8xf32> to vector<8x1xf32>
    %cst_28 = arith.constant 3.200000e+01 : f32
    %73 = vector.broadcast %cst_28 : f32 to vector<8x1xf32>
    %74 = arith.divf %72, %73 : vector<8x1xf32>
    %75 = vector.broadcast %74 : vector<8x1xf32> to vector<8x32xf32>
    %76 = arith.subf %70, %75 : vector<8x32xf32>
    %77 = arith.mulf %76, %76 : vector<8x32xf32>
    %cst_29 = arith.constant dense<0.000000e+00> : vector<8xf32>
    %78 = vector.multi_reduction <add>, %77, %cst_29 [1] : vector<8x32xf32> to vector<8xf32>
    %79 = vector.shape_cast %78 : vector<8xf32> to vector<8x1xf32>
    %cst_30 = arith.constant 3.200000e+01 : f32
    %80 = vector.broadcast %cst_30 : f32 to vector<8x1xf32>
    %81 = arith.divf %79, %80 : vector<8x1xf32>
    %82 = vector.broadcast %74 : vector<8x1xf32> to vector<8x32xf32>
    %83 = arith.subf %70, %82 : vector<8x32xf32>
    %cst_31 = arith.constant 9.99999974E-6 : f32
    %84 = vector.broadcast %cst_31 : f32 to vector<8x1xf32>
    %85 = arith.addf %81, %84 : vector<8x1xf32>
    %86 = math.rsqrt %85 : vector<8x1xf32>
    %87 = vector.broadcast %86 : vector<8x1xf32> to vector<8x32xf32>
    %88 = arith.mulf %83, %87 : vector<8x32xf32>
    %89 = vector.broadcast %12 : vector<1x32xf32> to vector<8x32xf32>
    %90 = arith.mulf %88, %89 : vector<8x32xf32>
    %91 = vector.broadcast %13 : vector<1x32xf32> to vector<8x32xf32>
    %92 = arith.addf %90, %91 : vector<8x32xf32>
    %c96 = arith.constant 96 : index
    %c0_32 = arith.constant 0 : index
    %93 = vector.load %arg1[%c96, %c0_32] : memref<192x128xbf16, #tpu.memory_space<vmem>>, vector<32x128xbf16>
    %94 = vector.extract_strided_slice %93 {offsets = [0, 0], sizes = [32, 96], strides = [1, 1]} : vector<32x128xbf16> to vector<32x96xbf16>
    %95 = vector.extract_strided_slice %93 {offsets = [0, 96], sizes = [32, 32], strides = [1, 1]} : vector<32x128xbf16> to vector<32x32xbf16>
    %c128 = arith.constant 128 : index
    %c0_33 = arith.constant 0 : index
    %96 = vector.load %arg1[%c128, %c0_33] : memref<192x128xbf16, #tpu.memory_space<vmem>>, vector<32x128xbf16>
    %c160 = arith.constant 160 : index
    %c0_34 = arith.constant 0 : index
    %97 = vector.load %arg1[%c160, %c0_34] : memref<192x128xbf16, #tpu.memory_space<vmem>>, vector<32x128xbf16>
    %c8 = arith.constant 8 : index
    %c0_35 = arith.constant 0 : index
    %98 = vector.load %arg2[%c8, %c0_35] : memref<17x128xf32, #tpu.memory_space<vmem>>, vector<1x96xf32>
    %c9 = arith.constant 9 : index
    %c0_36 = arith.constant 0 : index
    %99 = vector.load %arg2[%c9, %c0_36] : memref<17x128xf32, #tpu.memory_space<vmem>>, vector<1x128xf32>
    %c10 = arith.constant 10 : index
    %c0_37 = arith.constant 0 : index
    %100 = vector.load %arg2[%c10, %c0_37] : memref<17x128xf32, #tpu.memory_space<vmem>>, vector<1x32xf32>
    %c11 = arith.constant 11 : index
    %c0_38 = arith.constant 0 : index
    %101 = vector.load %arg2[%c11, %c0_38] : memref<17x128xf32, #tpu.memory_space<vmem>>, vector<1x32xf32>
    %c12 = arith.constant 12 : index
    %c0_39 = arith.constant 0 : index
    %102 = vector.load %arg2[%c12, %c0_39] : memref<17x128xf32, #tpu.memory_space<vmem>>, vector<1x32xf32>
    %c13 = arith.constant 13 : index
    %c0_40 = arith.constant 0 : index
    %103 = vector.load %arg2[%c13, %c0_40] : memref<17x128xf32, #tpu.memory_space<vmem>>, vector<1x32xf32>
    %c14 = arith.constant 14 : index
    %c0_41 = arith.constant 0 : index
    %104 = vector.load %arg2[%c14, %c0_41] : memref<17x128xf32, #tpu.memory_space<vmem>>, vector<1x32xf32>
    %c15 = arith.constant 15 : index
    %c0_42 = arith.constant 0 : index
    %105 = vector.load %arg2[%c15, %c0_42] : memref<17x128xf32, #tpu.memory_space<vmem>>, vector<1x32xf32>
    %106 = arith.truncf %92 : vector<8x32xf32> to vector<8x32xbf16>
    %cst_43 = arith.constant dense<0.000000e+00> : vector<8x96xf32>
    %107 = tpu.matmul %106, %94, %cst_43 {dimension_numbers = #tpu.dot_dimension_numbers<[1], [0], [0], [1], [0, 0, 1, 1], [], []>} : vector<8x32xbf16>, vector<32x96xbf16>, vector<8x96xf32> -> vector<8x96xf32>
    %108 = vector.broadcast %98 : vector<1x96xf32> to vector<8x96xf32>
    %109 = arith.addf %107, %108 : vector<8x96xf32>
    %110 = vector.extract_strided_slice %109 {offsets = [0, 0], sizes = [8, 32], strides = [1, 1]} : vector<8x96xf32> to vector<8x32xf32>
    %111 = vector.extract_strided_slice %109 {offsets = [0, 32], sizes = [8, 32], strides = [1, 1]} : vector<8x96xf32> to vector<8x32xf32>
    %112 = vector.extract_strided_slice %109 {offsets = [0, 64], sizes = [8, 32], strides = [1, 1]} : vector<8x96xf32> to vector<8x32xf32>
    %cst_44 = arith.constant dense<0.000000e+00> : vector<8x8xf32>
    %113 = tpu.matmul %110, %111, %cst_44 {dimension_numbers = #tpu.dot_dimension_numbers<[1], [1], [0], [0], [0, 0, 1, 0], [], []>} : vector<8x32xf32>, vector<8x32xf32>, vector<8x8xf32> -> vector<8x8xf32>
    %cst_45 = arith.constant dense<0xFF800000> : vector<8xf32>
    %114 = vector.multi_reduction <maximumf>, %113, %cst_45 [1] : vector<8x8xf32> to vector<8xf32>
    %115 = vector.shape_cast %114 : vector<8xf32> to vector<8x1xf32>
    %116 = vector.broadcast %115 : vector<8x1xf32> to vector<8x8xf32>
    %117 = arith.subf %113, %116 : vector<8x8xf32>
    %118 = math.exp %117 : vector<8x8xf32>
    %cst_46 = arith.constant dense<0.000000e+00> : vector<8xf32>
    %119 = vector.multi_reduction <add>, %118, %cst_46 [1] : vector<8x8xf32> to vector<8xf32>
    %120 = vector.shape_cast %119 : vector<8xf32> to vector<8x1xf32>
    %121 = tpu.reciprocal %120 {approx = true} : vector<8x1xf32> -> vector<8x1xf32>
    %122 = vector.broadcast %121 : vector<8x1xf32> to vector<8x8xf32>
    %123 = arith.mulf %118, %122 : vector<8x8xf32>
    %cst_47 = arith.constant dense<0.000000e+00> : vector<8x32xf32>
    %124 = tpu.matmul %123, %112, %cst_47 {dimension_numbers = #tpu.dot_dimension_numbers<[1], [0], [0], [1], [0, 0, 1, 1], [], []>} : vector<8x8xf32>, vector<8x32xf32>, vector<8x32xf32> -> vector<8x32xf32>
    %125 = arith.truncf %124 : vector<8x32xf32> to vector<8x32xbf16>
    %cst_48 = arith.constant dense<0.000000e+00> : vector<8x32xf32>
    %126 = tpu.matmul %125, %95, %cst_48 {dimension_numbers = #tpu.dot_dimension_numbers<[1], [0], [0], [1], [0, 0, 1, 1], [], []>} : vector<8x32xbf16>, vector<32x32xbf16>, vector<8x32xf32> -> vector<8x32xf32>
    %127 = arith.addf %92, %126 : vector<8x32xf32>
    %128 = vector.broadcast %100 : vector<1x32xf32> to vector<8x32xf32>
    %129 = arith.addf %127, %128 : vector<8x32xf32>
    %cst_49 = arith.constant dense<0.000000e+00> : vector<8xf32>
    %130 = vector.multi_reduction <add>, %129, %cst_49 [1] : vector<8x32xf32> to vector<8xf32>
    %131 = vector.shape_cast %130 : vector<8xf32> to vector<8x1xf32>
    %cst_50 = arith.constant 3.200000e+01 : f32
    %132 = vector.broadcast %cst_50 : f32 to vector<8x1xf32>
    %133 = arith.divf %131, %132 : vector<8x1xf32>
    %134 = vector.broadcast %133 : vector<8x1xf32> to vector<8x32xf32>
    %135 = arith.subf %129, %134 : vector<8x32xf32>
    %136 = arith.mulf %135, %135 : vector<8x32xf32>
    %cst_51 = arith.constant dense<0.000000e+00> : vector<8xf32>
    %137 = vector.multi_reduction <add>, %136, %cst_51 [1] : vector<8x32xf32> to vector<8xf32>
    %138 = vector.shape_cast %137 : vector<8xf32> to vector<8x1xf32>
    %cst_52 = arith.constant 3.200000e+01 : f32
    %139 = vector.broadcast %cst_52 : f32 to vector<8x1xf32>
    %140 = arith.divf %138, %139 : vector<8x1xf32>
    %141 = vector.broadcast %133 : vector<8x1xf32> to vector<8x32xf32>
    %142 = arith.subf %129, %141 : vector<8x32xf32>
    %cst_53 = arith.constant 9.99999974E-6 : f32
    %143 = vector.broadcast %cst_53 : f32 to vector<8x1xf32>
    %144 = arith.addf %140, %143 : vector<8x1xf32>
    %145 = math.rsqrt %144 : vector<8x1xf32>
    %146 = vector.broadcast %145 : vector<8x1xf32> to vector<8x32xf32>
    %147 = arith.mulf %142, %146 : vector<8x32xf32>
    %148 = vector.broadcast %101 : vector<1x32xf32> to vector<8x32xf32>
    %149 = arith.mulf %147, %148 : vector<8x32xf32>
    %150 = vector.broadcast %102 : vector<1x32xf32> to vector<8x32xf32>
    %151 = arith.addf %149, %150 : vector<8x32xf32>
    %152 = arith.truncf %151 : vector<8x32xf32> to vector<8x32xbf16>
    %cst_54 = arith.constant dense<0.000000e+00> : vector<8x128xf32>
    %153 = tpu.matmul %152, %96, %cst_54 {dimension_numbers = #tpu.dot_dimension_numbers<[1], [0], [0], [1], [0, 0, 1, 1], [], []>} : vector<8x32xbf16>, vector<32x128xbf16>, vector<8x128xf32> -> vector<8x128xf32>
    %154 = vector.broadcast %99 : vector<1x128xf32> to vector<8x128xf32>
    %155 = arith.addf %153, %154 : vector<8x128xf32>
    %cst_55 = arith.constant 0.000000e+00 : f32
    %156 = vector.broadcast %cst_55 : f32 to vector<8x128xf32>
    %157 = arith.maximumf %155, %156 : vector<8x128xf32>
    %158 = arith.truncf %157 : vector<8x128xf32> to vector<8x128xbf16>
    %cst_56 = arith.constant dense<0.000000e+00> : vector<8x32xf32>
    %159 = tpu.matmul %158, %97, %cst_56 {dimension_numbers = #tpu.dot_dimension_numbers<[1], [1], [0], [0], [0, 0, 1, 0], [], []>} : vector<8x128xbf16>, vector<32x128xbf16>, vector<8x32xf32> -> vector<8x32xf32>
    %160 = vector.broadcast %103 : vector<1x32xf32> to vector<8x32xf32>
    %161 = arith.addf %159, %160 : vector<8x32xf32>
    %162 = arith.addf %151, %161 : vector<8x32xf32>
    %cst_57 = arith.constant dense<0.000000e+00> : vector<8xf32>
    %163 = vector.multi_reduction <add>, %162, %cst_57 [1] : vector<8x32xf32> to vector<8xf32>
    %164 = vector.shape_cast %163 : vector<8xf32> to vector<8x1xf32>
    %cst_58 = arith.constant 3.200000e+01 : f32
    %165 = vector.broadcast %cst_58 : f32 to vector<8x1xf32>
    %166 = arith.divf %164, %165 : vector<8x1xf32>
    %167 = vector.broadcast %166 : vector<8x1xf32> to vector<8x32xf32>
    %168 = arith.subf %162, %167 : vector<8x32xf32>
    %169 = arith.mulf %168, %168 : vector<8x32xf32>
    %cst_59 = arith.constant dense<0.000000e+00> : vector<8xf32>
    %170 = vector.multi_reduction <add>, %169, %cst_59 [1] : vector<8x32xf32> to vector<8xf32>
    %171 = vector.shape_cast %170 : vector<8xf32> to vector<8x1xf32>
    %cst_60 = arith.constant 3.200000e+01 : f32
    %172 = vector.broadcast %cst_60 : f32 to vector<8x1xf32>
    %173 = arith.divf %171, %172 : vector<8x1xf32>
    %174 = vector.broadcast %166 : vector<8x1xf32> to vector<8x32xf32>
    %175 = arith.subf %162, %174 : vector<8x32xf32>
    %cst_61 = arith.constant 9.99999974E-6 : f32
    %176 = vector.broadcast %cst_61 : f32 to vector<8x1xf32>
    %177 = arith.addf %173, %176 : vector<8x1xf32>
    %178 = math.rsqrt %177 : vector<8x1xf32>
    %179 = vector.broadcast %178 : vector<8x1xf32> to vector<8x32xf32>
    %180 = arith.mulf %175, %179 : vector<8x32xf32>
    %181 = vector.broadcast %104 : vector<1x32xf32> to vector<8x32xf32>
    %182 = arith.mulf %180, %181 : vector<8x32xf32>
    %183 = vector.broadcast %105 : vector<1x32xf32> to vector<8x32xf32>
    %184 = arith.addf %182, %183 : vector<8x32xf32>
    %cst_62 = arith.constant dense<0.000000e+00> : vector<32xf32>
    %185 = vector.multi_reduction <add>, %184, %cst_62 [0] : vector<8x32xf32> to vector<32xf32>
    %186 = vector.shape_cast %185 : vector<32xf32> to vector<1x32xf32>
    %cst_63 = arith.constant 8.000000e+00 : f32
    %187 = vector.broadcast %cst_63 : f32 to vector<1x32xf32>
    %188 = arith.divf %186, %187 : vector<1x32xf32>
    %c16 = arith.constant 16 : index
    %c0_64 = arith.constant 0 : index
    %189 = vector.load %arg2[%c16, %c0_64] : memref<17x128xf32, #tpu.memory_space<vmem>>, vector<1x128xf32>
    %190 = vector.extract_strided_slice %189 {offsets = [0, 0], sizes = [1, 32], strides = [1, 1]} : vector<1x128xf32> to vector<1x32xf32>
    %191 = vector.extract_strided_slice %189 {offsets = [0, 32], sizes = [1, 1], strides = [1, 1]} : vector<1x128xf32> to vector<1x1xf32>
    %192 = arith.mulf %188, %190 : vector<1x32xf32>
    %cst_65 = arith.constant dense<0.000000e+00> : vector<1xf32>
    %193 = vector.multi_reduction <add>, %192, %cst_65 [1] : vector<1x32xf32> to vector<1xf32>
    %194 = vector.shape_cast %193 : vector<1xf32> to vector<1x1xf32>
    %195 = arith.addf %194, %191 : vector<1x1xf32>
    %c0_66 = arith.constant 0 : index
    %c0_67 = arith.constant 0 : index
    %196 = vector.load %arg3[%c0_66, %c0_67] : memref<1x1xf32, #tpu.memory_space<vmem>>, vector<1x1xf32>
    tpu.vector_store %arg3[%c0_66, %c0_67], %195 {strides = array<i32>} : memref<1x1xf32, #tpu.memory_space<vmem>>, vector<1x1xf32>,
    return
  }
}

</mosaic_0001>

<llo_original>
// kernel: vtn_forward.1
$region0: #{vtn_forward.1}
  #allocation0 [shape = 'u32[]', space=smem, size = 0x4, offset = 0x4, fixed_abs, tag = 'smem constant byte address 0x4 - core index']
  #allocation1 [shape = 'u32[72,128]{1,0:T(1,128)}', space=vmem, size = 0x9000, scoped, tag = 'internal scratch']
  %s0 = inlined_call_operand.vmem [shape: f32[8,32], index: 0, kind: input, shape index: {}]
  %s1 = inlined_call_operand.vmem [shape: bf16[192,128], index: 1, kind: input, shape index: {}]
  %s2 = inlined_call_operand.vmem [shape: f32[17,128], index: 2, kind: input, shape index: {}]
  %s3 = inlined_call_operand.hbm [shape: f32[1,1], index: 3, kind: output, shape index: {}]
  %s4 = sld [smem:[#allocation0]]
  $region22: #{vtn_forward.1} parent=0
    _
  %s6 = ssub.s32 1, %s4
  %s7 = scalar_select 0, %s6, %s4
  $region1: #{vtn_forward.1} parent=0
    #allocation2 [shape = 'u8[512]{0}', space=vmem, size = 0x400, scoped, tag = 'output window, operand 0, single buffered']
    #allocation3 [shape = 's32[1]{0}', space=sflag, size = 0x4, scoped, tag = 'scoped memory for vtn_forward.1']
    %8 = vsyncpa [#allocation3], 0
    // Predicated region
    $region2: #{vtn_forward.1} parent=1 // pred_check
      _
    $region3: #{vtn_forward.1} parent=1 // pred_check_branch
      %10 = sbr.rel (0) target = $region5
    $region4: #{vtn_forward.1} parent=1 // pred_region
      _
    $region5: #{vtn_forward.1} parent=1 // pred_fallthru
      _
    // Predicated region
    $region6: #{vtn_forward.1} parent=1 // pred_check
      _
    $region7: #{vtn_forward.1} parent=1 // pred_check_branch
      %12 = sbr.rel (0) target = $region9
    $region8: #{vtn_forward.1} parent=1 // pred_region
      _
    $region9: #{vtn_forward.1} parent=1 // pred_fallthru
      _
    // Predicated region
    $region10: #{vtn_forward.1} parent=1 // pred_check
      _
    $region11: #{vtn_forward.1} parent=1 // pred_check_branch
      %14 = sbr.rel (0) target = $region13
    $region12: #{vtn_forward.1} parent=1 // pred_region
      _
    $region13: #{vtn_forward.1} parent=1 // pred_fallthru
      _
    %v16 = vld [vmem:[%s0] sm:$0xff]
    %v17 = vld [vmem:[%s1] sm:$0xf]
    %v18 = vld [vmem:[%s1 + $0x4] sm:$0xf]
    %v19 = vld [vmem:[%s1 + $0x8] sm:$0xf]
    %v20 = vld [vmem:[%s1 + $0xc] sm:$0xf]
    %v21 = vld [vmem:[%s1 + $0x10] sm:$0xf]
    %v22 = vld [vmem:[%s1 + $0x14] sm:$0xf]
    %v23 = vld [vmem:[%s1 + $0x18] sm:$0xf]
    %v24 = vld [vmem:[%s1 + $0x1c] sm:$0xf]
    %v25 = vld [vmem:[%s1 + $0x20] sm:$0xf]
    %v26 = vld [vmem:[%s1 + $0x24] sm:$0xf]
    %v27 = vld [vmem:[%s1 + $0x28] sm:$0xf]
    %v28 = vld [vmem:[%s1 + $0x2c] sm:$0xf]
    %v29 = vld [vmem:[%s2] sm:$0x1]
    %v30 = vld [vmem:[%s2 + $0x1] sm:$0x1]
    %v31 = vld [vmem:[%s2 + $0x2] sm:$0x1]
    %v32 = vld [vmem:[%s2 + $0x3] sm:$0x1]
    %v33 = vld [vmem:[%s2 + $0x4] sm:$0x1]
    %v34 = vld [vmem:[%s2 + $0x5] sm:$0x1]
    %v35 = vld [vmem:[%s2 + $0x6] sm:$0x1]
    %v36 = vld [vmem:[%s2 + $0x7] sm:$0x1]
    %v37 = vpack.c.bf16 %v16, %v16
    %v38 = vperm.slane %v29, 0
    %v43 = vunpack.c.l.b16 %v17
    %v44 = vunpack.c.l.b16 %v18
    %v45 = vunpack.c.l.b16 %v19
    %v46 = vunpack.c.l.b16 %v20
    %v47 = vpack.c.b16 %v44, %v43
    %v48 = vpack.c.b16 %v46, %v45
    %vm51 = vcmask 261120
    %v53 = vsel %vm51, %v37, 0
    %55 = vmatpush.bf16.msra.mxu0 0
    %56 = vmatpush.bf16.msra.mxu0 0
    %57 = vmatpush.bf16.msra.mxu0 0
    %58 = vmatpush.bf16.msra.mxu0 0
    %59 = vmatpush.bf16.msra.mxu0 0
    %60 = vmatpush.bf16.msra.mxu0 0
    %61 = vmatpush.bf16.msra.mxu0 %v48
    %62 = vmatpush.bf16.msra.mxu0 %v47
    %63 = vmatmul.bf16.gmra.mxu0 %v53
    %v64 = vpop.f32.mrf.mxu0
    %v65 = vadd.f32 %v38, %v64
    %v66 = vpop.f32.mrf.mxu0
    %67 = vdwg.mxu0
    %69 = vrot.lane.b32.xlu0 %v65, 96
    %v70 = vpop.permute.xlu0 %69
    %v71 = vsel %vm51, %v65, 0
    %v73 = vsel %vm51, %v70, 0
    %75 = vmatpush.xpose.msra.mxu0 0.0
    %76 = vmatpush.xpose.msra.mxu0 0.0
    %77 = vmatpush.xpose.msra.mxu0 0.0
    %78 = vmatpush.xpose.msra.mxu0 0.0
    %79 = vmatpush.xpose.msra.mxu0 0.0
    %80 = vmatpush.xpose.msra.mxu0 0.0
    %81 = vmatpush.xpose.msra.mxu0 0.0
    %82 = vmatpush.xpose.msra.mxu0 0.0
    %83 = vmatpush.xpose.msra.mxu0 0.0
    %84 = vmatpush.xpose.msra.mxu0 0.0
    %85 = vmatpush.xpose.msra.mxu0 0.0
    %86 = vmatpush.xpose.msra.mxu0 0.0
    %87 = vmatpush.xpose.msra.mxu0 0.0
    %88 = vmatpush.xpose.msra.mxu0 0.0
    %89 = vmatpush.xpose.msra.mxu0 0.0
    %90 = vmatpush.xpose.msra.mxu0 %v73
    %91 = vmatmul.f32.gmra.mxu0 %v71
    %v92 = vpop.f32.mrf.mxu0
    %v93 = vadd.f32 0.0, %v92
    %94 = vdwg.mxu0
    %vm95 = vcmask 64512
    %v96 = vsel %vm95, %v93, -inf
    %97 = vmax.xlane.f32.xlu0 %v96
    %v98 = vpop.xlane.xlu0 %97
    %v99 = vsub.f32 %v93, %v98
    %v100 = vmul.f32 %v99, 1.442695
    %v101 = vpow.pop %v100
    %v102 = vsel %vm95, %v101, 0.0
    %103 = vadd.xlane.f32.xlu0 %v102
    %v104 = vpop.xlane.xlu0 %103
    %v105 = vrcp.pop %v104
    %v106 = vmul.f32 %v101, %v105
    %107 = vrot.lane.b32.xlu0 %v65, 64
    %v108 = vpop.permute.xlu0 %107
    %v111 = vsel %vm95, %v106, 0
    %113 = vmatpush.msra.mxu0 0.0
    %114 = vmatpush.msra.mxu0 0.0
    %115 = vmatpush.msra.mxu0 0.0
    %116 = vmatpush.msra.mxu0 0.0
    %117 = vmatpush.msra.mxu0 0.0
    %118 = vmatpush.msra.mxu0 0.0
    %119 = vmatpush.msra.mxu0 0.0
    %120 = vmatpush.msra.mxu0 0.0
    %121 = vmatpush.msra.mxu0 0.0
    %122 = vmatpush.msra.mxu0 0.0
    %123 = vmatpush.msra.mxu0 0.0
    %124 = vmatpush.msra.mxu0 0.0
    %125 = vmatpush.msra.mxu0 0.0
    %126 = vmatpush.msra.mxu0 0.0
    %127 = vmatpush.msra.mxu0 0.0
    %128 = vmatpush.msra.mxu0 %v108
    %129 = vmatmul.f32.gmra.mxu0 %v111
    %v130 = vpop.f32.mrf.mxu0
    %v131 = vadd.f32 0.0, %v130
    %132 = vdwg.mxu0
    %v133 = vpack.c.bf16 %v131, %v131
    %134 = vrot.lane.b32.xlu0 %v47, 32
    %v135 = vpop.permute.xlu0 %134
    %136 = vrot.lane.b32.xlu0 %v48, 32
    %v137 = vpop.permute.xlu0 %136
    %v141 = vsel %vm51, %v133, 0
    %143 = vmatpush.bf16.msra.mxu0 0
    %144 = vmatpush.bf16.msra.mxu0 0
    %145 = vmatpush.bf16.msra.mxu0 0
    %146 = vmatpush.bf16.msra.mxu0 0
    %147 = vmatpush.bf16.msra.mxu0 0
    %148 = vmatpush.bf16.msra.mxu0 0
    %149 = vmatpush.bf16.msra.mxu0 %v137
    %150 = vmatpush.bf16.msra.mxu0 %v135
    %151 = vmatmul.bf16.gmra.mxu0 %v141
    %v152 = vpop.f32.mrf.mxu0
    %v153 = vadd.f32 0.0, %v152
    %v154 = vpop.f32.mrf.mxu0
    %155 = vdwg.mxu0
    %v156 = vadd.f32 %v16, %v153
    %v157 = vperm.slane %v31, 0
    %v158 = vadd.f32 %v156, %v157
    %v159 = vsel %vm51, %v158, 0.0
    %160 = vadd.xlane.f32.xlu0 %v159
    %v161 = vpop.xlane.xlu0 %160
    %v162 = vrcp.pop 32.0
    %v163 = vmul.f32 32.0, %v162
    %v164 = vsub.f32 1.0, %v163
    %v165 = vmul.f32 %v162, %v164
    %v166 = vadd.f32 %v162, %v165
    %vm167 = vweird.f32 %v162
    %v168 = vsel %vm167, %v162, %v166
    %v169 = vmul.f32 %v161, %v168
    %v170 = vsub.f32 %v158, %v169
    %v171 = vmul.f32 %v170, %v170
    %v172 = vsel %vm51, %v171, 0.0
    %173 = vadd.xlane.f32.xlu0 %v172
    %v174 = vpop.xlane.xlu0 %173
    %v175 = vmul.f32 %v174, %v168
    %v176 = vadd.f32 %v175, 1e-05
    %v177 = vrsqrt.pop %v176
    %v178 = vmul.f32 %v177, %v176
    %v179 = vmul.f32 %v178, %v177
    %v180 = vmul.f32 0.5, %v179
    %v181 = vsub.f32 1.5, %v180
    %v182 = vmul.f32 %v177, %v181
    %vm183 = vweird.f32 %v176
    %vm184 = vweird.f32 %v177
    %vm185 = vmor %vm183, %vm184
    %v186 = vsel %vm185, %v177, %v182
    %v187 = vmul.f32 %v170, %v186
    %v188 = vperm.slane %v32, 0
    %v189 = vmul.f32 %v187, %v188
    %v190 = vperm.slane %v33, 0
    %v191 = vadd.f32 %v189, %v190
    %v192 = vpack.c.bf16 %v191, %v191
    %v193 = vperm.slane %v30, 0
    %v198 = vunpack.c.l.b16 %v21
    %v199 = vunpack.c.l.b16 %v22
    %v200 = vunpack.c.l.b16 %v23
    %v201 = vunpack.c.l.b16 %v24
    %v202 = vpack.c.b16 %v199, %v198
    %v203 = vpack.c.b16 %v201, %v200
    %v207 = vsel %vm51, %v192, 0
    %209 = vmatpush.bf16.msra.mxu0 0
    %210 = vmatpush.bf16.msra.mxu0 0
    %211 = vmatpush.bf16.msra.mxu0 0
    %212 = vmatpush.bf16.msra.mxu0 0
    %213 = vmatpush.bf16.msra.mxu0 0
    %214 = vmatpush.bf16.msra.mxu0 0
    %215 = vmatpush.bf16.msra.mxu0 %v203
    %216 = vmatpush.bf16.msra.mxu0 %v202
    %217 = vmatmul.bf16.gmra.mxu0 %v207
    %v218 = vpop.f32.mrf.mxu0
    %v219 = vadd.f32 %v193, %v218
    %v220 = vpop.f32.mrf.mxu0
    %221 = vdwg.mxu0
    %v222 = vmax.f32 %v219, 0.0
    %v223 = vpack.c.bf16 %v222, %v222
    %v224 = vperm.slane %v34, 0
    %v229 = vunpack.c.l.b16 %v25
    %v230 = vunpack.c.l.b16 %v26
    %v231 = vunpack.c.l.b16 %v27
    %v232 = vunpack.c.l.b16 %v28
    %v233 = vpack.c.b16 %v230, %v229
    %v234 = vpack.c.b16 %v232, %v231
    %237 = vmatpush.bf16.xpose.msra.mxu0 0
    %238 = vmatpush.bf16.xpose.msra.mxu0 0
    %239 = vmatpush.bf16.xpose.msra.mxu0 0
    %240 = vmatpush.bf16.xpose.msra.mxu0 0
    %241 = vmatpush.bf16.xpose.msra.mxu0 0
    %242 = vmatpush.bf16.xpose.msra.mxu0 0
    %243 = vmatpush.bf16.xpose.msra.mxu0 %v234
    %244 = vmatpush.bf16.xpose.msra.mxu0 %v233
    %245 = vmatmul.bf16.gmra.mxu0 %v223
    %v246 = vpop.f32.mrf.mxu0
    %v247 = vadd.f32 %v224, %v246
    %v248 = vpop.f32.mrf.mxu0
    %249 = vdwg.mxu0
    %v250 = vadd.f32 %v191, %v247
    %v251 = vsel %vm51, %v250, 0.0
    %252 = vadd.xlane.f32.xlu0 %v251
    %v253 = vpop.xlane.xlu0 %252
    %v254 = vmul.f32 %v253, %v168
    %v255 = vsub.f32 %v250, %v254
    %v256 = vmul.f32 %v255, %v255
    %v257 = vsel %vm51, %v256, 0.0
    %258 = vadd.xlane.f32.xlu0 %v257
    %v259 = vpop.xlane.xlu0 %258
    %v260 = vmul.f32 %v259, %v168
    %v261 = vadd.f32 %v260, 1e-05
    %v262 = vrsqrt.pop %v261
    %v263 = vmul.f32 %v262, %v261
    %v264 = vmul.f32 %v263, %v262
    %v265 = vmul.f32 0.5, %v264
    %v266 = vsub.f32 1.5, %v265
    %v267 = vmul.f32 %v262, %v266
    %vm268 = vweird.f32 %v261
    %vm269 = vweird.f32 %v262
    %vm270 = vmor %vm268, %vm269
    %v271 = vsel %vm270, %v262, %v267
    %v272 = vmul.f32 %v255, %v271
    %v273 = vperm.slane %v35, 0
    %v274 = vmul.f32 %v272, %v273
    %v275 = vperm.slane %v36, 0
    %v276 = vadd.f32 %v274, %v275
    %v277 = vld [vmem:[%s1 + $0x30] sm:$0xf]
    %v278 = vld [vmem:[%s1 + $0x34] sm:$0xf]
    %v279 = vld [vmem:[%s1 + $0x38] sm:$0xf]
    %v280 = vld [vmem:[%s1 + $0x3c] sm:$0xf]
    %v281 = vld [vmem:[%s1 + $0x40] sm:$0xf]
    %v282 = vld [vmem:[%s1 + $0x44] sm:$0xf]
    %v283 = vld [vmem:[%s1 + $0x48] sm:$0xf]
    %v284 = vld [vmem:[%s1 + $0x4c] sm:$0xf]
    %v285 = vld [vmem:[%s1 + $0x50] sm:$0xf]
    %v286 = vld [vmem:[%s1 + $0x54] sm:$0xf]
    %v287 = vld [vmem:[%s1 + $0x58] sm:$0xf]
    %v288 = vld [vmem:[%s1 + $0x5c] sm:$0xf]
    %v289 = vld [vmem:[%s2 + $0x8] sm:$0x1]
    %v290 = vld [vmem:[%s2 + $0x9] sm:$0x1]
    %v291 = vld [vmem:[%s2 + $0xa] sm:$0x1]
    %v292 = vld [vmem:[%s2 + $0xb] sm:$0x1]
    %v293 = vld [vmem:[%s2 + $0xc] sm:$0x1]
    %v294 = vld [vmem:[%s2 + $0xd] sm:$0x1]
    %v295 = vld [vmem:[%s2 + $0xe] sm:$0x1]
    %v296 = vld [vmem:[%s2 + $0xf] sm:$0x1]
    %v297 = vpack.c.bf16 %v276, %v276
    %v298 = vperm.slane %v289, 0
    %v303 = vunpack.c.l.b16 %v277
    %v304 = vunpack.c.l.b16 %v278
    %v305 = vunpack.c.l.b16 %v279
    %v306 = vunpack.c.l.b16 %v280
    %v307 = vpack.c.b16 %v304, %v303
    %v308 = vpack.c.b16 %v306, %v305
    %v312 = vsel %vm51, %v297, 0
    %314 = vmatpush.bf16.msra.mxu0 0
    %315 = vmatpush.bf16.msra.mxu0 0
    %316 = vmatpush.bf16.msra.mxu0 0
    %317 = vmatpush.bf16.msra.mxu0 0
    %318 = vmatpush.bf16.msra.mxu0 0
    %319 = vmatpush.bf16.msra.mxu0 0
    %320 = vmatpush.bf16.msra.mxu0 %v308
    %321 = vmatpush.bf16.msra.mxu0 %v307
    %322 = vmatmul.bf16.gmra.mxu0 %v312
    %v323 = vpop.f32.mrf.mxu0
    %v324 = vadd.f32 %v298, %v323
    %v325 = vpop.f32.mrf.mxu0
    %326 = vdwg.mxu0
    %328 = vrot.lane.b32.xlu0 %v324, 96
    %v329 = vpop.permute.xlu0 %328
    %v330 = vsel %vm51, %v324, 0
    %v332 = vsel %vm51, %v329, 0
    %334 = vmatpush.xpose.msra.mxu0 0.0
    %335 = vmatpush.xpose.msra.mxu0 0.0
    %336 = vmatpush.xpose.msra.mxu0 0.0
    %337 = vmatpush.xpose.msra.mxu0 0.0
    %338 = vmatpush.xpose.msra.mxu0 0.0
    %339 = vmatpush.xpose.msra.mxu0 0.0
    %340 = vmatpush.xpose.msra.mxu0 0.0
    %341 = vmatpush.xpose.msra.mxu0 0.0
    %342 = vmatpush.xpose.msra.mxu0 0.0
    %343 = vmatpush.xpose.msra.mxu0 0.0
    %344 = vmatpush.xpose.msra.mxu0 0.0
    %345 = vmatpush.xpose.msra.mxu0 0.0
    %346 = vmatpush.xpose.msra.mxu0 0.0
    %347 = vmatpush.xpose.msra.mxu0 0.0
    %348 = vmatpush.xpose.msra.mxu0 0.0
    %349 = vmatpush.xpose.msra.mxu0 %v332
    %350 = vmatmul.f32.gmra.mxu0 %v330
    %v351 = vpop.f32.mrf.mxu0
    %v352 = vadd.f32 0.0, %v351
    %353 = vdwg.mxu0
    %v354 = vsel %vm95, %v352, -inf
    %355 = vmax.xlane.f32.xlu0 %v354
    %v356 = vpop.xlane.xlu0 %355
    %v357 = vsub.f32 %v352, %v356
    %v358 = vmul.f32 %v357, 1.442695
    %v359 = vpow.pop %v358
    %v360 = vsel %vm95, %v359, 0.0
    %361 = vadd.xlane.f32.xlu0 %v360
    %v362 = vpop.xlane.xlu0 %361
    %v363 = vrcp.pop %v362
    %v364 = vmul.f32 %v359, %v363
    %365 = vrot.lane.b32.xlu0 %v324, 64
    %v366 = vpop.permute.xlu0 %365
    %v369 = vsel %vm95, %v364, 0
    %371 = vmatpush.msra.mxu0 0.0
    %372 = vmatpush.msra.mxu0 0.0
    %373 = vmatpush.msra.mxu0 0.0
    %374 = vmatpush.msra.mxu0 0.0
    %375 = vmatpush.msra.mxu0 0.0
    %376 = vmatpush.msra.mxu0 0.0
    %377 = vmatpush.msra.mxu0 0.0
    %378 = vmatpush.msra.mxu0 0.0
    %379 = vmatpush.msra.mxu0 0.0
    %380 = vmatpush.msra.mxu0 0.0
    %381 = vmatpush.msra.mxu0 0.0
    %382 = vmatpush.msra.mxu0 0.0
    %383 = vmatpush.msra.mxu0 0.0
    %384 = vmatpush.msra.mxu0 0.0
    %385 = vmatpush.msra.mxu0 0.0
    %386 = vmatpush.msra.mxu0 %v366
    %387 = vmatmul.f32.gmra.mxu0 %v369
    %v388 = vpop.f32.mrf.mxu0
    %v389 = vadd.f32 0.0, %v388
    %390 = vdwg.mxu0
    %v391 = vpack.c.bf16 %v389, %v389
    %392 = vrot.lane.b32.xlu0 %v307, 32
    %v393 = vpop.permute.xlu0 %392
    %394 = vrot.lane.b32.xlu0 %v308, 32
    %v395 = vpop.permute.xlu0 %394
    %v399 = vsel %vm51, %v391, 0
    %401 = vmatpush.bf16.msra.mxu0 0
    %402 = vmatpush.bf16.msra.mxu0 0
    %403 = vmatpush.bf16.msra.mxu0 0
    %404 = vmatpush.bf16.msra.mxu0 0
    %405 = vmatpush.bf16.msra.mxu0 0
    %406 = vmatpush.bf16.msra.mxu0 0
    %407 = vmatpush.bf16.msra.mxu0 %v395
    %408 = vmatpush.bf16.msra.mxu0 %v393
    %409 = vmatmul.bf16.gmra.mxu0 %v399
    %v410 = vpop.f32.mrf.mxu0
    %v411 = vadd.f32 0.0, %v410
    %v412 = vpop.f32.mrf.mxu0
    %413 = vdwg.mxu0
    %v414 = vadd.f32 %v276, %v411
    %v415 = vperm.slane %v291, 0
    %v416 = vadd.f32 %v414, %v415
    %v417 = vsel %vm51, %v416, 0.0
    %418 = vadd.xlane.f32.xlu0 %v417
    %v419 = vpop.xlane.xlu0 %418
    %v420 = vmul.f32 %v419, %v168
    %v421 = vsub.f32 %v416, %v420
    %v422 = vmul.f32 %v421, %v421
    %v423 = vsel %vm51, %v422, 0.0
    %424 = vadd.xlane.f32.xlu0 %v423
    %v425 = vpop.xlane.xlu0 %424
    %v426 = vmul.f32 %v425, %v168
    %v427 = vadd.f32 %v426, 1e-05
    %v428 = vrsqrt.pop %v427
    %v429 = vmul.f32 %v428, %v427
    %v430 = vmul.f32 %v429, %v428
    %v431 = vmul.f32 0.5, %v430
    %v432 = vsub.f32 1.5, %v431
    %v433 = vmul.f32 %v428, %v432
    %vm434 = vweird.f32 %v427
    %vm435 = vweird.f32 %v428
    %vm436 = vmor %vm434, %vm435
    %v437 = vsel %vm436, %v428, %v433
    %v438 = vmul.f32 %v421, %v437
    %v439 = vperm.slane %v292, 0
    %v440 = vmul.f32 %v438, %v439
    %v441 = vperm.slane %v293, 0
    %v442 = vadd.f32 %v440, %v441
    %v443 = vpack.c.bf16 %v442, %v442
    %v444 = vperm.slane %v290, 0
    %v449 = vunpack.c.l.b16 %v281
    %v450 = vunpack.c.l.b16 %v282
    %v451 = vunpack.c.l.b16 %v283
    %v452 = vunpack.c.l.b16 %v284
    %v453 = vpack.c.b16 %v450, %v449
    %v454 = vpack.c.b16 %v452, %v451
    %v458 = vsel %vm51, %v443, 0
    %460 = vmatpush.bf16.msra.mxu0 0
    %461 = vmatpush.bf16.msra.mxu0 0
    %462 = vmatpush.bf16.msra.mxu0 0
    %463 = vmatpush.bf16.msra.mxu0 0
    %464 = vmatpush.bf16.msra.mxu0 0
    %465 = vmatpush.bf16.msra.mxu0 0
    %466 = vmatpush.bf16.msra.mxu0 %v454
    %467 = vmatpush.bf16.msra.mxu0 %v453
    %468 = vmatmul.bf16.gmra.mxu0 %v458
    %v469 = vpop.f32.mrf.mxu0
    %v470 = vadd.f32 %v444, %v469
    %v471 = vpop.f32.mrf.mxu0
    %472 = vdwg.mxu0
    %v473 = vmax.f32 %v470, 0.0
    %v474 = vpack.c.bf16 %v473, %v473
    %v475 = vperm.slane %v294, 0
    %v480 = vunpack.c.l.b16 %v285
    %v481 = vunpack.c.l.b16 %v286
    %v482 = vunpack.c.l.b16 %v287
    %v483 = vunpack.c.l.b16 %v288
    %v484 = vpack.c.b16 %v481, %v480
    %v485 = vpack.c.b16 %v483, %v482
    %488 = vmatpush.bf16.xpose.msra.mxu0 0
    %489 = vmatpush.bf16.xpose.msra.mxu0 0
    %490 = vmatpush.bf16.xpose.msra.mxu0 0
    %491 = vmatpush.bf16.xpose.msra.mxu0 0
    %492 = vmatpush.bf16.xpose.msra.mxu0 0
    %493 = vmatpush.bf16.xpose.msra.mxu0 0
    %494 = vmatpush.bf16.xpose.msra.mxu0 %v485
    %495 = vmatpush.bf16.xpose.msra.mxu0 %v484
    %496 = vmatmul.bf16.gmra.mxu0 %v474
    %v497 = vpop.f32.mrf.mxu0
    %v498 = vadd.f32 %v475, %v497
    %v499 = vpop.f32.mrf.mxu0
    %500 = vdwg.mxu0
    %v501 = vadd.f32 %v442, %v498
    %v502 = vsel %vm51, %v501, 0.0
    %503 = vadd.xlane.f32.xlu0 %v502
    %v504 = vpop.xlane.xlu0 %503
    %v505 = vmul.f32 %v504, %v168
    %v506 = vsub.f32 %v501, %v505
    %v507 = vmul.f32 %v506, %v506
    %v508 = vsel %vm51, %v507, 0.0
    %509 = vadd.xlane.f32.xlu0 %v508
    %v510 = vpop.xlane.xlu0 %509
    %v511 = vmul.f32 %v510, %v168
    %v512 = vadd.f32 %v511, 1e-05
    %v513 = vrsqrt.pop %v512
    %v514 = vmul.f32 %v513, %v512
    %v515 = vmul.f32 %v514, %v513
    %v516 = vmul.f32 0.5, %v515
    %v517 = vsub.f32 1.5, %v516
    %v518 = vmul.f32 %v513, %v517
    %vm519 = vweird.f32 %v512
    %vm520 = vweird.f32 %v513
    %vm521 = vmor %vm519, %vm520
    %v522 = vsel %vm521, %v513, %v518
    %v523 = vmul.f32 %v506, %v522
    %v524 = vperm.slane %v295, 0
    %v525 = vmul.f32 %v523, %v524
    %v526 = vperm.slane %v296, 0
    %v527 = vadd.f32 %v525, %v526
    %v528 = vsel %vm51, %v527, 0.0
    %v529 = vrot.slane %v528, 4
    %v530 = vadd.f32 %v528, %v529
    %v531 = vrot.slane %v530, 2
    %v532 = vadd.f32 %v530, %v531
    %v533 = vrot.slane %v532, 1
    %v534 = vadd.f32 %v532, %v533
    %v535 = vrcp.pop 8.0
    %v536 = vmul.f32 8.0, %v535
    %v537 = vsub.f32 1.0, %v536
    %v538 = vmul.f32 %v535, %v537
    %v539 = vadd.f32 %v535, %v538
    %vm540 = vweird.f32 %v535
    %v541 = vsel %vm540, %v535, %v539
    %v542 = vmul.f32 %v534, %v541
    %v543 = vld [vmem:[%s2 + $0x10] sm:$0x1]
    %v544 = vmul.f32 %v542, %v543
    %vm545 = vcmask 253952
    %v546 = vsel %vm545, %v544, 0.0
    %547 = vadd.xlane.f32.xlu0 %v546
    %v548 = vpop.xlane.xlu0 %547
    %v549 = vadd.f32 %v548, %v543
    %551 = vrot.lane.b32.xlu0 %v549, 96
    %v552 = vpop.permute.xlu0 %551
    %vm554 = vcmask 0
    %555 = vst.msk [vmem:[#allocation2] sm:$0x1] %vm554, %v552
    // Predicated region
    $region14: #{vtn_forward.1} parent=1 // pred_check
      _
    $region15: #{vtn_forward.1} parent=1 // pred_check_branch
      %557 = sbr.rel (0) target = $region17
    $region16: #{vtn_forward.1} parent=1 // pred_region
      %559 = vsyncadd [#allocation3], 0
      %s561 = sshll.u32 [#allocation2], 4
      %s562 = int_to_ptr.vmem [resolvable:$true] %s561
      %s563 = sshll.u32 %s3, 4
      %s564 = int_to_ptr.hbm [resolvable:$true] %s563
      %566 = dma.vmem_to_hbm [thread:$0]  %s562, 16, %s564, [#allocation3]
    $region17: #{vtn_forward.1} parent=1 // pred_fallthru
      _
    // Predicated region
    $region18: #{vtn_forward.1} parent=1 // pred_check
      _
    $region19: #{vtn_forward.1} parent=1 // pred_check_branch
      %568 = sbr.rel (0) target = $region21
    $region20: #{vtn_forward.1} parent=1 // pred_region
      %570 = dma.done [#allocation3], 16
    $region21: #{vtn_forward.1} parent=1 // pred_fallthru
      _
    %571 = vsyncpa [#allocation3], 1

</llo_original>
